<compile_context>
chip_gen: v7x
topology: tpu7x:2x2x1
jax: 0.10.0
libtpu: 0.0.40
codegen_flags: <defaults>
</compile_context>

<pallas_src>
import itertools

import numpy as np

import jax
import jax.numpy as jnp
from jax import lax
from jax.experimental import pallas as pl
from jax.experimental.pallas import tpu as pltpu


def _lsa_kernel(lens_ref, cost_ref, out_ref, row4col_s, col4row_s):
    """Solve one LSA problem per grid step (one batch element).

    lens_ref : (B,) int32 SMEM (scalar prefetch) -- number of valid object rows.
    cost_ref : (1, N, N) f32 VMEM block, cost[row=object, col=prediction].
    out_ref  : (1, 2, N) int32 -- [col4row ; column-free flag].
    row4col_s, col4row_s : (N,) int32 SMEM scratch (scalar-indexed state).
    """
    b = pl.program_id(0)
    L = lens_ref[b]
    N = cost_ref.shape[1]

    lane = lax.broadcasted_iota(jnp.int32, (1, N), 1)  # column ids along lanes

    # Scratch persists across grid steps -> re-init the scalar state per batch.
    def init_body(t, c):
        row4col_s[t] = -1
        col4row_s[t] = -1
        return c

    lax.fori_loop(0, N, init_body, 0)

    def solve_row(cur_row, carry):
        v, colfree, col4row_vec = carry
        # Tie-break penalty: prefer unassigned columns among equal-cost minima.
        penalty = N * (1 - colfree)            # 0 for free columns, N otherwise

        # ---- shortest augmenting path search (Dijkstra over columns) -------
        def dij_cond(c):
            return jnp.logical_not(c[4])

        def dij_body(c):
            i, j_prev, minval, sink, _, SC, spc, path = c
            cost_i = cost_ref[0, pl.ds(i, 1), :]          # (1, N) dynamic row load
            cv = cost_i - v
            # u[i] via complementary slackness: u[i] = cost[i, j_prev] - v[j_prev]
            # (j_prev == -1 on the first step -> u = 0, matching u[cur_row] = 0).
            u_i = jnp.sum(jnp.where(lane == j_prev, cv, 0.0))
            r = (minval - u_i) + cv
            unscanned = SC == 0
            improved = jnp.logical_and(r < spc, unscanned)
            path = jnp.where(improved, i, path)
            spc = jnp.where(improved, r, spc)
            spc_m = jnp.where(unscanned, spc, jnp.inf)
            lowest = jnp.min(spc_m)
            is_min = spc_m <= lowest
            key = jnp.where(is_min, lane + penalty, 2 * N)
            mk = jnp.min(key)
            j = jnp.where(mk >= N, mk - N, mk).astype(jnp.int32)
            rj = row4col_s[j]                             # SMEM scalar lookup
            is_sink = rj < 0
            sink = jnp.where(is_sink, j, sink)
            i = jnp.where(is_sink, i, rj)
            SC = jnp.where(lane == j, 1, SC)
            return (i, j, lowest, sink, is_sink, SC, spc, path)

        dij_init = (cur_row,
                    jnp.full((), -1, jnp.int32),          # previous scanned column
                    jnp.full((), 0.0, jnp.float32),       # minVal
                    jnp.full((), -1, jnp.int32),          # sink
                    jnp.full((), False, jnp.bool_),       # done
                    jnp.zeros((1, N), jnp.int32),         # SC (scanned columns)
                    jnp.full((1, N), jnp.inf, jnp.float32),  # shortest path costs
                    jnp.zeros((1, N), jnp.int32))         # predecessor row per col
        _, _, minval, sink, _, SC, spc, path = lax.while_loop(
            dij_cond, dij_body, dij_init)

        # ---- dual update (columns only; row duals are never stored) --------
        v = v - jnp.where(SC > 0, minval - spc, 0.0)

        # ---- augment along the stored predecessor path ----------------------
        def aug_cond(c):
            return jnp.logical_not(c[1])

        def aug_body(c):
            j, _, c4r = c
            i2 = jnp.sum(jnp.where(lane == j, path, 0)).astype(jnp.int32)
            row4col_s[j] = i2
            old = col4row_s[i2]
            col4row_s[i2] = j
            c4r = jnp.where(lane == i2, j, c4r)
            stop = i2 == cur_row
            return (jnp.where(stop, j, old), stop, c4r)

        aug_init = (sink, jnp.full((), False, jnp.bool_), col4row_vec)
        _, _, col4row_vec = lax.while_loop(aug_cond, aug_body, aug_init)

        colfree = jnp.where(lane == sink, 0, colfree)
        return (v, colfree, col4row_vec)

    carry0 = (jnp.zeros((1, N), jnp.float32),    # v (column duals)
              jnp.ones((1, N), jnp.int32),       # 1 if column unassigned
              jnp.full((1, N), -1, jnp.int32))   # col4row (per object row)
    _, colfree, col4row_vec = lax.fori_loop(0, L, solve_row, carry0)

    out_ref[0, 0:1, :] = col4row_vec
    out_ref[0, 1:2, :] = colfree


def matcher_forward(costs, object_valid_mask=None):
    """JAX/Pallas equivalent of Matcher.forward. Returns pred_idxs (B, N) int32.

    NOTE: the torch module returns int64; JAX default x64 is off, so int32 here.
    """
    costs = costs.astype(jnp.float32)
    B, n1, n2 = costs.shape
    assert n1 == n2, "Matcher expects square cost matrices (preds == object slots)."
    N = n1
    if object_valid_mask is None:
        object_valid_mask = jnp.ones((B, N), dtype=bool)
    lens = jnp.sum(object_valid_mask.astype(jnp.int32), axis=1)  # (B,)

    # cost_t[b, obj, pred] = costs[b, pred, obj]   (matches `costs[k][:, :L].T`)
    cost_t = jnp.swapaxes(costs, 1, 2)

    cost_estimate = pl.CostEstimate(
        flops=int(6 * B * N * N * N),
        transcendentals=0,
        bytes_accessed=int(4 * B * N * N + 4 * B * 2 * N + 4 * B),
    )

    out = pl.pallas_call(
        _lsa_kernel,
        out_shape=jax.ShapeDtypeStruct((B, 2, N), jnp.int32),
        grid_spec=pltpu.PrefetchScalarGridSpec(
            num_scalar_prefetch=1,
            grid=(B,),
            in_specs=[pl.BlockSpec((1, N, N), lambda b, lens_ref: (b, 0, 0))],
            out_specs=pl.BlockSpec((1, 2, N), lambda b, lens_ref: (b, 0, 0)),
            scratch_shapes=[pltpu.SMEM((N,), jnp.int32),   # row4col
                            pltpu.SMEM((N,), jnp.int32)],  # col4row
        ),
        compiler_params=pltpu.CompilerParams(
            dimension_semantics=("parallel",)),
        cost_estimate=cost_estimate,
    )(lens, cost_t)

    col4row = out[:, 0, :]                 # (B, N) assigned pred per object row
    col_is_free = out[:, 1, :] > 0         # (B, N) prediction column unassigned

    # Glue: assigned columns for the first L rows, then the unassigned columns in
    # increasing order (== torch.concatenate([pred_idx, default_idx[~isin]])).
    r_idx = jnp.arange(N, dtype=jnp.int32)[None, :]
    fill_sorted = jnp.sort(jnp.where(col_is_free, r_idx, N), axis=-1)
    pos = jnp.clip(r_idx - lens[:, None], 0, N - 1)
    fills = jnp.take_along_axis(fill_sorted, pos, axis=-1)
    pred_idxs = jnp.where(r_idx < lens[:, None], col4row, fills)
    return pred_idxs.astype(jnp.int32)


def _brute_force_optimal_cost(cost_mat, L):
    """Exhaustive optimal assignment cost for an (N, N) matrix, first L rows."""
    N = cost_mat.shape[0]
    best = None
    for perm in itertools.permutations(range(N), L):
        c = sum(cost_mat[r, perm[r]] for r in range(L))
        if best is None or c < best:
            best = c
    return best


if __name__ == "__main__":
    key = jax.random.PRNGKey(0)
    k1, k2 = jax.random.split(key)

    # Main example: batch=2, 16 predictions x 16 object slots, second batch
    # element has only 11 valid objects.
    B, N = 2, 16
    costs = jax.random.uniform(k1, (B, N, N), dtype=jnp.float32)
    lens = jnp.array([16, 11], dtype=jnp.int32)
    mask = jnp.arange(N)[None, :] < lens[:, None]

    pred_idxs = matcher_forward(costs, mask)
    jax.block_until_ready(pred_idxs)

    # Structural checks (mirrors `assert torch.all(pred_idxs >= 0)` + permutation).
    assert pred_idxs.shape == (B, N)
    assert bool(jnp.all(pred_idxs >= 0)), "Matcher error!"
    assert bool(jnp.all(jnp.sort(pred_idxs, axis=-1) == jnp.arange(N)[None, :]))

    # Optimality check against brute force at a tiny size (compare assignment
    # cost rather than exact indices, since tie-breaking may legally differ).
    Bs, Ns = 2, 6
    small_costs = jax.random.uniform(k2, (Bs, Ns, Ns), dtype=jnp.float32)
    small_lens = np.array([6, 4], dtype=np.int32)
    small_mask = jnp.arange(Ns)[None, :] < jnp.asarray(small_lens)[:, None]
    small_pred = np.asarray(matcher_forward(small_costs, small_mask))
    jax.block_until_ready(small_pred)

    cnp = np.asarray(small_costs, dtype=np.float64)
    for bb in range(Bs):
        L = int(small_lens[bb])
        cm = cnp[bb].T                                 # cm[object, prediction]
        best = _brute_force_optimal_cost(cm, L)
        got = sum(cm[r, int(small_pred[bb, r])] for r in range(L))
        assert abs(got - best) < 1e-5, (bb, got, best)
        # permutation + sorted unmatched tail
        assert sorted(small_pred[bb].tolist()) == list(range(Ns))
        tail = small_pred[bb, L:].tolist()
        assert tail == sorted(tail)

    print("KERNEL_OK")
</pallas_src>

<mosaic_0001>
module attributes {stable_mosaic.version = 11 : i64} {
  func.func @_lsa_kernel(%arg0: i32, %arg1: memref<2xi32, #tpu.memory_space<smem>>, %arg2: memref<1x16x16xf32, #tpu.memory_space<vmem>>, %arg3: memref<1x2x16xi32, #tpu.memory_space<vmem>>, %arg4: memref<16xi32, #tpu.memory_space<smem>>, %arg5: memref<16xi32, #tpu.memory_space<smem>>) attributes {dimension_semantics = [#tpu.dimension_semantics<parallel>], iteration_bounds = array<i64: 2>, scalar_prefetch = 1 : i64, scratch_operands = 2 : i64, tpu.core_type = #tpu.core_type<tc>, window_params = [{transform_indices = @transform_0, window_bounds = array<i64: 1, 16, 16>}, {transform_indices = @transform_1, window_bounds = array<i64: 1, 2, 16>}]} {
    %0 = arith.index_cast %arg0 : i32 to index
    %1 = memref.load %arg1[%0] : memref<2xi32, #tpu.memory_space<smem>>
    %2 = tpu.iota {dimensions = array<i32: 1>} : vector<1x16xi32>
    %c0_i32 = arith.constant 0 : i32
    %c16_i32 = arith.constant 16 : i32
    %3 = arith.addi %c0_i32, %c16_i32 : i32
    %c1_i32 = arith.constant 1 : i32
    scf.for %arg6 = %c0_i32 to %3 step %c1_i32  : i32 {
      %c-1_i32_8 = arith.constant -1 : i32
      %16 = arith.index_cast %arg6 : i32 to index
      %17 = memref.load %arg4[%16] : memref<16xi32, #tpu.memory_space<smem>>
      memref.store %c-1_i32_8, %arg4[%16] : memref<16xi32, #tpu.memory_space<smem>>
      %c-1_i32_9 = arith.constant -1 : i32
      %18 = arith.index_cast %arg6 : i32 to index
      %19 = memref.load %arg5[%18] : memref<16xi32, #tpu.memory_space<smem>>
      memref.store %c-1_i32_9, %arg5[%18] : memref<16xi32, #tpu.memory_space<smem>>
    }
    %c16_i32_0 = arith.constant 16 : i32
    %cst = arith.constant 0.000000e+00 : f32
    %4 = vector.broadcast %cst : f32 to vector<1x16xf32>
    %c1_i32_1 = arith.constant 1 : i32
    %5 = vector.broadcast %c1_i32_1 : i32 to vector<1x16xi32>
    %c-1_i32 = arith.constant -1 : i32
    %6 = vector.broadcast %c-1_i32 : i32 to vector<1x16xi32>
    %c0_i32_2 = arith.constant 0 : i32
    %7 = arith.subi %1, %c0_i32_2 : i32
    %8 = arith.addi %c0_i32_2, %7 : i32
    %c1_i32_3 = arith.constant 1 : i32
    %9:3 = scf.for %arg6 = %c0_i32_2 to %8 step %c1_i32_3 iter_args(%arg7 = %4, %arg8 = %5, %arg9 = %6) -> (vector<1x16xf32>, vector<1x16xi32>, vector<1x16xi32>)  : i32 {
      %c1_i32_8 = arith.constant 1 : i32
      %16 = vector.broadcast %c1_i32_8 : i32 to vector<1x16xi32>
      %17 = arith.subi %16, %arg8 : vector<1x16xi32>
      %c16_i32_9 = arith.constant 16 : i32
      %18 = vector.broadcast %c16_i32_9 : i32 to vector<1x16xi32>
      %19 = arith.muli %18, %17 : vector<1x16xi32>
      %c0_i32_10 = arith.constant 0 : i32
      %20 = vector.broadcast %c0_i32_10 : i32 to vector<1x16xi32>
      %cst_11 = arith.constant 0x7F800000 : f32
      %21 = vector.broadcast %cst_11 : f32 to vector<1x16xf32>
      %c0_i32_12 = arith.constant 0 : i32
      %22 = vector.broadcast %c0_i32_12 : i32 to vector<1x16xi32>
      %c-1_i32_13 = arith.constant -1 : i32
      %cst_14 = arith.constant 0.000000e+00 : f32
      %c-1_i32_15 = arith.constant -1 : i32
      %false = arith.constant false
      %23:8 = scf.while (%arg10 = %arg6, %arg11 = %c-1_i32_13, %arg12 = %cst_14, %arg13 = %c-1_i32_15, %arg14 = %false, %arg15 = %20, %arg16 = %21, %arg17 = %22) : (i32, i32, f32, i32, i1, vector<1x16xi32>, vector<1x16xf32>, vector<1x16xi32>) -> (i32, i32, f32, i32, i1, vector<1x16xi32>, vector<1x16xf32>, vector<1x16xi32>) {
        %true = arith.constant true
        %36 = arith.xori %arg14, %true : i1
        scf.condition(%36) %arg10, %arg11, %arg12, %arg13, %arg14, %arg15, %arg16, %arg17 : i32, i32, f32, i32, i1, vector<1x16xi32>, vector<1x16xf32>, vector<1x16xi32>
      } do {
      ^bb0(%arg10: i32, %arg11: i32, %arg12: f32, %arg13: i32, %arg14: i1, %arg15: vector<1x16xi32>, %arg16: vector<1x16xf32>, %arg17: vector<1x16xi32>):
        %c0_20 = arith.constant 0 : index
        %36 = arith.index_cast %arg10 : i32 to index
        %c0_21 = arith.constant 0 : index
        %37 = vector.load %arg2[%c0_20, %36, %c0_21] : memref<1x16x16xf32, #tpu.memory_space<vmem>>, vector<1x1x16xf32>
        %38 = vector.shape_cast %37 : vector<1x1x16xf32> to vector<1x16xf32>
        %39 = arith.subf %38, %arg7 : vector<1x16xf32>
        %40 = vector.broadcast %arg11 : i32 to vector<1x16xi32>
        %41 = arith.cmpi eq, %2, %40 : vector<1x16xi32>
        %cst_22 = arith.constant 0.000000e+00 : f32
        %42 = vector.broadcast %cst_22 : f32 to vector<1x16xf32>
        %43 = arith.select %41, %39, %42 : vector<1x16xi1>, vector<1x16xf32>
        %44 = vector.shape_cast %43 : vector<1x16xf32> to vector<1x1x16xf32>
        %cst_23 = arith.constant dense<0.000000e+00> : vector<1xf32>
        %45 = vector.multi_reduction <add>, %44, %cst_23 [1, 2] : vector<1x1x16xf32> to vector<1xf32>
        %46 = vector.shape_cast %45 : vector<1xf32> to vector<1x1x1xf32>
        %47 = vector.extract %46[0, 0, 0] : f32 from vector<1x1x1xf32>
        %48 = arith.subf %arg12, %47 : f32
        %49 = vector.broadcast %48 : f32 to vector<1x16xf32>
        %50 = arith.addf %49, %39 : vector<1x16xf32>
        %c0_i32_24 = arith.constant 0 : i32
        %51 = vector.broadcast %c0_i32_24 : i32 to vector<1x16xi32>
        %52 = arith.cmpi eq, %arg15, %51 : vector<1x16xi32>
        %53 = arith.cmpf olt, %50, %arg16 : vector<1x16xf32>
        %54 = arith.andi %53, %52 : vector<1x16xi1>
        %55 = vector.broadcast %arg10 : i32 to vector<1x16xi32>
        %56 = arith.select %54, %55, %arg17 : vector<1x16xi1>, vector<1x16xi32>
        %57 = arith.select %54, %50, %arg16 : vector<1x16xi1>, vector<1x16xf32>
        %cst_25 = arith.constant 0x7F800000 : f32
        %58 = vector.broadcast %cst_25 : f32 to vector<1x16xf32>
        %59 = arith.select %52, %57, %58 : vector<1x16xi1>, vector<1x16xf32>
        %60 = vector.shape_cast %59 : vector<1x16xf32> to vector<1x1x16xf32>
        %cst_26 = arith.constant dense<0x7F800000> : vector<1xf32>
        %61 = vector.multi_reduction <minimumf>, %60, %cst_26 [1, 2] : vector<1x1x16xf32> to vector<1xf32>
        %62 = vector.shape_cast %61 : vector<1xf32> to vector<1x1x1xf32>
        %63 = vector.extract %62[0, 0, 0] : f32 from vector<1x1x1xf32>
        %64 = vector.broadcast %63 : f32 to vector<1x16xf32>
        %65 = arith.cmpf ole, %59, %64 : vector<1x16xf32>
        %66 = arith.addi %2, %19 : vector<1x16xi32>
        %c32_i32 = arith.constant 32 : i32
        %67 = vector.broadcast %c32_i32 : i32 to vector<1x16xi32>
        %68 = arith.select %65, %66, %67 : vector<1x16xi1>, vector<1x16xi32>
        %69 = vector.shape_cast %68 : vector<1x16xi32> to vector<1x1x16xi32>
        %cst_27 = arith.constant dense<2147483647> : vector<1xi32>
        %70 = vector.multi_reduction <minsi>, %69, %cst_27 [1, 2] : vector<1x1x16xi32> to vector<1xi32>
        %71 = vector.shape_cast %70 : vector<1xi32> to vector<1x1x1xi32>
        %72 = vector.extract %71[0, 0, 0] : i32 from vector<1x1x1xi32>
        %c16_i32_28 = arith.constant 16 : i32
        %73 = arith.cmpi sge, %72, %c16_i32_28 : i32
        %c16_i32_29 = arith.constant 16 : i32
        %74 = arith.subi %72, %c16_i32_29 : i32
        %75 = arith.select %73, %74, %72 : i32
        %76 = arith.index_cast %75 : i32 to index
        %77 = memref.load %arg4[%76] : memref<16xi32, #tpu.memory_space<smem>>
        %c0_i32_30 = arith.constant 0 : i32
        %78 = arith.cmpi slt, %77, %c0_i32_30 : i32
        %79 = arith.select %78, %75, %arg13 : i32
        %80 = arith.select %78, %arg10, %77 : i32
        %81 = vector.broadcast %75 : i32 to vector<1x16xi32>
        %82 = arith.cmpi eq, %2, %81 : vector<1x16xi32>
        %c1_i32_31 = arith.constant 1 : i32
        %83 = vector.broadcast %c1_i32_31 : i32 to vector<1x16xi32>
        %84 = arith.select %82, %83, %arg15 : vector<1x16xi1>, vector<1x16xi32>
        scf.yield %80, %75, %63, %79, %78, %84, %57, %56 : i32, i32, f32, i32, i1, vector<1x16xi32>, vector<1x16xf32>, vector<1x16xi32>
      }
      %c0_i32_16 = arith.constant 0 : i32
      %24 = vector.broadcast %c0_i32_16 : i32 to vector<1x16xi32>
      %25 = arith.cmpi sgt, %23#5, %24 : vector<1x16xi32>
      %26 = vector.broadcast %23#2 : f32 to vector<1x16xf32>
      %27 = arith.subf %26, %23#6 : vector<1x16xf32>
      %cst_17 = arith.constant 0.000000e+00 : f32
      %28 = vector.broadcast %cst_17 : f32 to vector<1x16xf32>
      %29 = arith.select %25, %27, %28 : vector<1x16xi1>, vector<1x16xf32>
      %30 = arith.subf %arg7, %29 : vector<1x16xf32>
      %false_18 = arith.constant false
      %31:3 = scf.while (%arg10 = %23#3, %arg11 = %false_18, %arg12 = %arg9) : (i32, i1, vector<1x16xi32>) -> (i32, i1, vector<1x16xi32>) {
        %true = arith.constant true
        %36 = arith.xori %arg11, %true : i1
        scf.condition(%36) %arg10, %arg11, %arg12 : i32, i1, vector<1x16xi32>
      } do {
      ^bb0(%arg10: i32, %arg11: i1, %arg12: vector<1x16xi32>):
        %36 = vector.broadcast %arg10 : i32 to vector<1x16xi32>
        %37 = arith.cmpi eq, %2, %36 : vector<1x16xi32>
        %c0_i32_20 = arith.constant 0 : i32
        %38 = vector.broadcast %c0_i32_20 : i32 to vector<1x16xi32>
        %39 = arith.select %37, %23#7, %38 : vector<1x16xi1>, vector<1x16xi32>
        %40 = vector.shape_cast %39 : vector<1x16xi32> to vector<1x1x16xi32>
        %cst_21 = arith.constant dense<0> : vector<1xi32>
        %41 = vector.multi_reduction <add>, %40, %cst_21 [1, 2] : vector<1x1x16xi32> to vector<1xi32>
        %42 = vector.shape_cast %41 : vector<1xi32> to vector<1x1x1xi32>
        %43 = vector.extract %42[0, 0, 0] : i32 from vector<1x1x1xi32>
        %44 = arith.index_cast %arg10 : i32 to index
        %45 = memref.load %arg4[%44] : memref<16xi32, #tpu.memory_space<smem>>
        memref.store %43, %arg4[%44] : memref<16xi32, #tpu.memory_space<smem>>
        %46 = arith.index_cast %43 : i32 to index
        %47 = memref.load %arg5[%46] : memref<16xi32, #tpu.memory_space<smem>>
        %48 = arith.index_cast %43 : i32 to index
        %49 = memref.load %arg5[%48] : memref<16xi32, #tpu.memory_space<smem>>
        memref.store %arg10, %arg5[%48] : memref<16xi32, #tpu.memory_space<smem>>
        %50 = vector.broadcast %43 : i32 to vector<1x16xi32>
        %51 = arith.cmpi eq, %2, %50 : vector<1x16xi32>
        %52 = vector.broadcast %arg10 : i32 to vector<1x16xi32>
        %53 = arith.select %51, %52, %arg12 : vector<1x16xi1>, vector<1x16xi32>
        %54 = arith.cmpi eq, %43, %arg6 : i32
        %55 = arith.select %54, %arg10, %47 : i32
        scf.yield %55, %54, %53 : i32, i1, vector<1x16xi32>
      }
      %32 = vector.broadcast %23#3 : i32 to vector<1x16xi32>
      %33 = arith.cmpi eq, %2, %32 : vector<1x16xi32>
      %c0_i32_19 = arith.constant 0 : i32
      %34 = vector.broadcast %c0_i32_19 : i32 to vector<1x16xi32>
      %35 = arith.select %33, %34, %arg8 : vector<1x16xi1>, vector<1x16xi32>
      scf.yield %30, %35, %31#2 : vector<1x16xf32>, vector<1x16xi32>, vector<1x16xi32>
    }
    %c0 = arith.constant 0 : index
    %c0_4 = arith.constant 0 : index
    %c0_5 = arith.constant 0 : index
    %10 = vector.load %arg3[%c0, %c0_4, %c0_5] : memref<1x2x16xi32, #tpu.memory_space<vmem>>, vector<1x1x16xi32>
    %11 = vector.shape_cast %10 : vector<1x1x16xi32> to vector<1x16xi32>
    %12 = vector.shape_cast %9#2 : vector<1x16xi32> to vector<1x1x16xi32>
    tpu.vector_store %arg3[%c0, %c0_4, %c0_5], %12 {strides = array<i32>} : memref<1x2x16xi32, #tpu.memory_space<vmem>>, vector<1x1x16xi32>,
    %c0_6 = arith.constant 0 : index
    %c1 = arith.constant 1 : index
    %c0_7 = arith.constant 0 : index
    %13 = vector.load %arg3[%c0_6, %c1, %c0_7] : memref<1x2x16xi32, #tpu.memory_space<vmem>>, vector<1x1x16xi32>
    %14 = vector.shape_cast %13 : vector<1x1x16xi32> to vector<1x16xi32>
    %15 = vector.shape_cast %9#1 : vector<1x16xi32> to vector<1x1x16xi32>
    tpu.vector_store %arg3[%c0_6, %c1, %c0_7], %15 {strides = array<i32>} : memref<1x2x16xi32, #tpu.memory_space<vmem>>, vector<1x1x16xi32>,
    return
  }
  func.func @transform_0(%arg0: i32, %arg1: memref<2xi32, #tpu.memory_space<smem>>) -> (i32, i32, i32) {
    %c0_i32 = arith.constant 0 : i32
    %c0_i32_0 = arith.constant 0 : i32
    %c0_i32_1 = arith.constant 0 : i32
    return %arg0, %c0_i32, %c0_i32_0 : i32, i32, i32
  }
  func.func @transform_1(%arg0: i32, %arg1: memref<2xi32, #tpu.memory_space<smem>>) -> (i32, i32, i32) {
    %c0_i32 = arith.constant 0 : i32
    %c0_i32_0 = arith.constant 0 : i32
    %c0_i32_1 = arith.constant 0 : i32
    return %arg0, %c0_i32, %c0_i32_0 : i32, i32, i32
  }
}

</mosaic_0001>

<llo_original>
// kernel: tpu_custom_call.1
$region0: #{tpu_custom_call.1}
  #allocation0 [shape = 'u32[]', space=smem, size = 0x4, offset = 0x4, fixed_abs, tag = 'smem constant byte address 0x4 - core index']
  #allocation1 [shape = 'u32[144,128]{1,0:T(1,128)}', space=vmem, size = 0x12000, scoped, tag = 'internal scratch']
  #allocation2 [shape = 's32[16]{0:T(128)}', space=smem, size = 0x200, scoped, tag = 'scratch operand']
  #allocation3 [shape = 's32[16]{0:T(128)}', space=smem, size = 0x200, scoped, tag = 'scratch operand']
  #allocation4 [shape = 's32[1]{0}', space=sflag, size = 0x4, scoped, tag = 'scoped memory for tpu_custom_call.1']
  #allocation5 [shape = 'u8[512]{0}', space=smem, size = 0x200, scoped, tag = 'prefetched SMEM operand 0']
  %s0 = inlined_call_operand.hbm [shape: s32[2], index: 0, kind: input, shape index: {}]
  %s1 = inlined_call_operand.hbm [shape: f32[2,16,16], index: 1, kind: input, shape index: {}]
  %s2 = inlined_call_operand.hbm [shape: s32[2,2,16], index: 2, kind: output, shape index: {}]
  %s3 = sld [smem:[#allocation0]]
  $region69: #{tpu_custom_call.1} parent=0
    _
  %s5 = ssub.s32 1, %s3
  %s6 = scalar_select 0, %s5, %s3
  %8 = dma.hbm_to_smem %s0, 16, [#allocation5], [#allocation4]
  %9 = dma.done [#allocation4], 16
  %10 = sfence
  $region1: #{tpu_custom_call.1} parent=0
    #allocation6 [shape = 'u8[16384]{0}', space=vmem, size = 0x4000, scoped, tag = 'input window, operand 1']
    #allocation7 [shape = 's32[2]{0}', space=sflag, size = 0x8, scoped, tag = 'scoped memory for tpu_custom_call.1']
    #allocation8 [shape = 's32[2]{0}', space=sflag, size = 0x8, scoped, tag = 'scoped memory for tpu_custom_call.1']
    #allocation9 [shape = 'u8[2048]{0}', space=vmem, size = 0x800, scoped, tag = 'output window, operand 0']
    %11 = vsyncpa [#allocation7], 0
    %s12 = scalar_lea.sflag [#allocation7], 1
    %13 = vsyncpa %s12, 0
    %14 = vsyncpa [#allocation8], 0
    %s15 = scalar_lea.sflag [#allocation8], 1
    %16 = vsyncpa %s15, 0
    loop: start=0, step=1, limit=4
    $region2: #{tpu_custom_call.1} parent=1 // loop_pre_header
      _
    $region3: #{tpu_custom_call.1} parent=1 // loop_header
      %s18 = sphi 0, %s22
      %p19 = scmp.ge.s32.totalorder %s18, 4
      %s28 = sphi 0, %s30
      %s31 = sphi 0, %s28
      %s32 = sphi 0, %s31
      %s48 = sphi 0, %s32
      %s54 = sphi 0, %s56
      %s57 = sphi 0, %s54
      %s58 = sphi 0, %s57
      %s74 = sphi 0, %s58
    $region4: #{tpu_custom_call.1} parent=1 // loop_header_branch
      %21 = sbr.rel (%p19) target = $region8
    $region5: #{tpu_custom_call.1} parent=1 // loop_body
      %s23 = ssub.s32 %s18, 1
      %s24 = ssub.s32 %s18, 2
      %s25 = sadd.s32 %s18, 1
      %s26 = ssub.s32 %s18, %s25
      %p27 = scmp.eq.s32.totalorder %s26, 0
      %s29 = sadd.s32 %s28, 1
      %s30 = scalar_select %p27, %s28, %s29
      %p33 = pneg %p27
      %p34 = scmp.eq.s32.totalorder %s18, 1
      %p35 = por %p33, %p34
      %p36 = scmp.ne.s32.totalorder %s28, %s31
      %p37 = scmp.eq.s32.totalorder %s18, 0
      %p38 = por %p36, %p37
      %p39 = scmp.ne.s32.totalorder %s28, %s31
      %p40 = scmp.eq.s32.totalorder %s23, 1
      %p41 = por %p39, %p40
      %p42 = scmp.ne.s32.totalorder %s31, %s32
      %p43 = scmp.eq.s32.totalorder %s23, 0
      %p44 = por %p42, %p43
      %p45 = scmp.ne.s32.totalorder %s31, %s32
      %p46 = scmp.eq.s32.totalorder %s24, 1
      %p47 = por %p45, %p46
      %p49 = scmp.ne.s32.totalorder %s32, %s48
      %p50 = scmp.eq.s32.totalorder %s24, 0
      %p51 = por %p49, %p50
      %s52 = ssub.s32 %s18, %s25
      %p53 = scmp.eq.s32.totalorder %s52, 0
      %s55 = sadd.s32 %s54, 1
      %s56 = scalar_select %p53, %s54, %s55
      %p59 = pneg %p53
      %p60 = scmp.eq.s32.totalorder %s18, 1
      %p61 = por %p59, %p60
      %p62 = scmp.ne.s32.totalorder %s54, %s57
      %p63 = scmp.eq.s32.totalorder %s18, 0
      %p64 = por %p62, %p63
      %p65 = scmp.ne.s32.totalorder %s54, %s57
      %p66 = scmp.eq.s32.totalorder %s23, 1
      %p67 = por %p65, %p66
      %p68 = scmp.ne.s32.totalorder %s57, %s58
      %p69 = scmp.eq.s32.totalorder %s23, 0
      %p70 = por %p68, %p69
      %p71 = scmp.ne.s32.totalorder %s57, %s58
      %p72 = scmp.eq.s32.totalorder %s24, 1
      %p73 = por %p71, %p72
      %p75 = scmp.ne.s32.totalorder %s58, %s74
      %p76 = scmp.eq.s32.totalorder %s24, 0
      %p77 = por %p75, %p76
      %p78 = scmp.le.s32.totalorder 1, %s18
      %p79 = scmp.lt.s32.totalorder %s18, 3
      %p80 = pnand %p78, %p79
      %p81 = pneg %p80
      // Predicated region
      $region9: #{tpu_custom_call.1} parent=5 // pred_check
        _
      $region10: #{tpu_custom_call.1} parent=5 // pred_check_branch
        %83 = sbr.rel (%p80) target = $region12
      $region11: #{tpu_custom_call.1} parent=5 // pred_region
        %s84 = ssub.s32 %s18, 1
      $region12: #{tpu_custom_call.1} parent=5 // pred_fallthru
        _
      %p85 = scmp.lt.s32.totalorder %s18, 2
      // Predicated region
      $region13: #{tpu_custom_call.1} parent=5 // pred_check
        %p86 = pneg %p85
      $region14: #{tpu_custom_call.1} parent=5 // pred_check_branch
        %88 = sbr.rel (%p86) target = $region16
      $region15: #{tpu_custom_call.1} parent=5 // pred_region
        // Predicated region
        $region17: #{tpu_custom_call.1} parent=15 // pred_check
          %p89 = pneg %p38
        $region18: #{tpu_custom_call.1} parent=15 // pred_check_branch
          %91 = sbr.rel (%p89) target = $region20
        $region19: #{tpu_custom_call.1} parent=15 // pred_region
          %s92 = sand.u32 %s28, 1
          %s93 = scalar_lea.sflag [#allocation7], %s92
          %s94 = sand.u32 %s28, 1
          %s95 = smul.addr %s94, 16
          %s96 = scalar_lea.vmem [#allocation6], %s95
          %s98 = ssub.s32 256, 256
          %99 = vsyncadd %s93, %s98
          %s100 = smul.addr %s18, 2
          %s101 = smul.addr %s100, 128
          %s102 = scalar_lea.hbm %s1, %s101
          %s103 = sshll.u32 %s96, 4
          %s104 = int_to_ptr.vmem [resolvable:$true] %s103
          %109 = dma.hbm_to_vmem [thread:$0]  %s102, 256, %s104, %s93, 128, 128, 8
        $region20: #{tpu_custom_call.1} parent=15 // pred_fallthru
          _
      $region16: #{tpu_custom_call.1} parent=5 // pred_fallthru
        _
      %p110 = scmp.le.s32.totalorder 1, %s18
      %p111 = scmp.lt.s32.totalorder %s18, 3
      %p112 = pnand %p110, %p111
      %p113 = pneg %p112
      // Predicated region
      $region21: #{tpu_custom_call.1} parent=5 // pred_check
        _
      $region22: #{tpu_custom_call.1} parent=5 // pred_check_branch
        %115 = sbr.rel (%p112) target = $region24
      $region23: #{tpu_custom_call.1} parent=5 // pred_region
        %s116 = ssub.s32 %s18, 1
        %s117 = sand.u32 %s31, 1
        %s118 = scalar_lea.sflag [#allocation7], %s117
        %s119 = sand.u32 %s31, 1
        %s120 = smul.addr %s119, 16
        %s121 = scalar_lea.vmem [#allocation6], %s120
        // Predicated region
        $region25: #{tpu_custom_call.1} parent=23 // pred_check
          %p122 = pneg %p44
        $region26: #{tpu_custom_call.1} parent=23 // pred_check_branch
          %124 = sbr.rel (%p122) target = $region28
        $region27: #{tpu_custom_call.1} parent=23 // pred_region
          %125 = dma.done %s118, 256
        $region28: #{tpu_custom_call.1} parent=23 // pred_fallthru
          _
        %s126 = sand.u32 %s31, 1
        %s127 = scalar_lea.sflag [#allocation7], %s126
        %s128 = sand.u32 %s31, 1
        %s129 = smul.addr %s128, 16
        %s130 = scalar_lea.vmem [#allocation6], %s129
        %p131 = pneg %p44
        %p132 = pneg %p41
        %p133 = pneg %p70
        %p134 = pneg %p67
        %s135 = sand.u32 %s57, 1
        %s136 = scalar_lea.sflag [#allocation8], %s135
        %s137 = sand.u32 %s57, 1
        %s138 = smul.addr %s137, 2
        %s139 = scalar_lea.vmem [#allocation9], %s138
        %s140 = sld [smem:[#allocation5 + %s23]]
        %v141 = vlaneseq
        %v142 = vand.u32 %v141, 127
        loop: start=0, step=1, limit=16
        $region29: #{tpu_custom_call.1} parent=23 // loop_pre_header
          _
        $region30: #{tpu_custom_call.1} parent=23 // loop_header
          %s144 = sphi 0, %s148
          %p145 = scmp.ge.s32.totalorder %s144, 16
        $region31: #{tpu_custom_call.1} parent=23 // loop_header_branch
          %147 = sbr.rel (%p145) target = $region35
        $region32: #{tpu_custom_call.1} parent=23 // loop_body
          %s149 = scalar_lea.smem [#allocation2], %s144
          %150 = sst [smem:[%s149]] 4294967295
          %s151 = scalar_lea.smem [#allocation3], %s144
          %152 = sst [smem:[%s151]] 4294967295
        $region33: #{tpu_custom_call.1} parent=23 // loop_footer
          %s148 = sadd.s32 1, %s144
        $region34: #{tpu_custom_call.1} parent=23 // loop_footer_branch
          %143 = sbr.rel target = $region30
        $region35: #{tpu_custom_call.1} parent=23 // loop_exit
          _
        // While loop
        $region36: #{tpu_custom_call.1} parent=23 // loop_pre_header
          _
        $region37: #{tpu_custom_call.1} parent=23 // loop_header
          %s154 = sphi 0, %s156
          %p155 = scmp.ge.s32.totalorder %s154, %s140
          %v159 = vphi 0.0, %v256
          %v160 = vphi 1, %v300
          %v161 = vphi 4294967295, %v260
        $region38: #{tpu_custom_call.1} parent=23 // loop_header_branch
          %158 = sbr.rel (%p155) target = $region42
        $region39: #{tpu_custom_call.1} parent=23 // loop_body
          %v162 = vsub.s32 1, %v160
          %v163 = vmul.u32 %v162, 16
          // While loop
          $region43: #{tpu_custom_call.1} parent=39 // loop_pre_header
            _
          $region44: #{tpu_custom_call.1} parent=39 // loop_header
            %s165 = sphi %s154, %s248
            %s166 = sphi 4294967295, %s244
            %s167 = sphi 0.0, %s212
            %s168 = sphi 4294967295, %s247
            %p169 = pphi 0, %p246
            %v170 = vphi 0, %v251
            %v171 = vphi inf, %v201
            %v172 = vphi 0, %v200
            %p173 = pneg %p169
          $region45: #{tpu_custom_call.1} parent=39 // loop_header_branch
            %175 = sbr.rel (%p169) target = $region49
          $region46: #{tpu_custom_call.1} parent=39 // loop_body
            %s176 = scalar_lea.vmem %s121, %s165 [#allocation6]
            %v177 = vld [vmem:[%s176] sm:$0x1]
            %v178 = vsub.f32 %v177, %v159
            %v179 = vstv %s166
            %vm180 = vcmp.eq.s32.totalorder %v142, %v179
            %v181 = vsel %vm180, %v178, 0.0
            %vm182 = vcmask 122880
            %v183 = vsel %vm182, %v181, 0.0
            %184 = vadd.xlane.f32.xlu0 %v183
            %v185 = vpop.xlane.xlu0 %184
            %v186 = vrot.slane %v185, 4
            %v187 = vadd.f32 %v185, %v186
            %v188 = vrot.slane %v187, 2
            %v189 = vadd.f32 %v187, %v188
            %v190 = vrot.slane %v189, 1
            %v191 = vadd.f32 %v189, %v190
            %s192 = vtos %v191
            %s193 = ssub.f32 %s167, %s192
            %v194 = vstv %s193
            %v195 = vadd.f32 %v194, %v178
            %vm196 = vcmp.eq.s32.totalorder %v170, 0
            %vm197 = vcmp.lt.f32.partialorder %v195, %v171
            %vm198 = vmand %vm197, %vm196
            %v199 = vstv %s165
            %v200 = vsel %vm198, %v199, %v172
            %v201 = vsel %vm198, %v195, %v171
            %v202 = vsel %vm196, %v201, inf
            %v203 = vsel %vm182, %v202, inf
            %204 = vmin.xlane.f32.xlu0 %v203
            %v205 = vpop.xlane.xlu0 %204
            %v206 = vrot.slane %v205, 4
            %v207 = vmin.f32 %v205, %v206
            %v208 = vrot.slane %v207, 2
            %v209 = vmin.f32 %v207, %v208
            %v210 = vrot.slane %v209, 1
            %v211 = vmin.f32 %v209, %v210
            %s212 = vtos %v211
            %v213 = vstv %s212
            %vm214 = vcmp.le.f32.partialorder %v202, %v213
            %v215 = vadd.s32 %v142, %v163
            %v216 = vsel %vm214, %v215, 32
            %v217 = vsel %vm182, %v216, 2147483647
            %v218 = vand.u32 %v217, 65535
            %v219 = vshra.s32 %v217, 16
            %v220 = vcvt.s32.f32 %v218
            %v221 = vcvt.s32.f32 %v219
            %222 = vmin.xlane.f32.xlu0 %v221
            %v223 = vpop.xlane.xlu0 %222
            %vm224 = vcmp.eq.f32.partialorder %v221, %v223
            %v225 = vsel %vm224, %v220, inf
            %226 = vmin.xlane.f32.xlu0 %v225
            %v227 = vpop.xlane.xlu0 %226
            %v228 = vcvt.f32.s32 %v227
            %v229 = vcvt.f32.s32 %v223
            %v230 = vshll.u32 %v229, 16
            %v231 = vadd.s32 %v230, %v228
            %v232 = vrot.slane %v231, 4
            %vm233 = vcmp.lt.s32.totalorder %v231, %v232
            %v234 = vsel %vm233, %v231, %v232
            %v235 = vrot.slane %v234, 2
            %vm236 = vcmp.lt.s32.totalorder %v234, %v235
            %v237 = vsel %vm236, %v234, %v235
            %v238 = vrot.slane %v237, 1
            %vm239 = vcmp.lt.s32.totalorder %v237, %v238
            %v240 = vsel %vm239, %v237, %v238
            %s241 = vtos %v240
            %p242 = scmp.ge.s32.totalorder %s241, 16
            %s243 = ssub.s32 %s241, 16
            %s244 = scalar_select %p242, %s243, %s241
            %s245 = sld [smem:[#allocation2 + %s244]]
            %p246 = scmp.lt.s32.totalorder %s245, 0
            %s247 = scalar_select %p246, %s244, %s168
            %s248 = scalar_select %p246, %s165, %s245
            %v249 = vstv %s244
            %vm250 = vcmp.eq.s32.totalorder %v142, %v249
            %v251 = vsel %vm250, 1, %v170
          $region47: #{tpu_custom_call.1} parent=39 // loop_footer
            _
          $region48: #{tpu_custom_call.1} parent=39 // loop_footer_branch
            %164 = sbr.rel target = $region44
          $region49: #{tpu_custom_call.1} parent=39 // loop_exit
            _
          %vm252 = vcmp.gt.s32.totalorder %v170, 0
          %v253 = vstv %s167
          %v254 = vsub.f32 %v253, %v171
          %v255 = vsel %vm252, %v254, 0.0
          %v256 = vsub.f32 %v159, %v255
          // While loop
          $region50: #{tpu_custom_call.1} parent=39 // loop_pre_header
            _
          $region51: #{tpu_custom_call.1} parent=39 // loop_header
            %s258 = sphi %s168, %s297
            %p259 = pphi 0, %p296
            %v260 = vphi %v161, %v295
            %p261 = pneg %p259
          $region52: #{tpu_custom_call.1} parent=39 // loop_header_branch
            %263 = sbr.rel (%p259) target = $region56
          $region53: #{tpu_custom_call.1} parent=39 // loop_body
            %v264 = vstv %s258
            %vm265 = vcmp.eq.s32.totalorder %v142, %v264
            %v266 = vsel %vm265, %v172, 0
            %vm267 = vcmask 122880
            %v268 = vsel %vm267, %v266, 0
            %v269 = vand.u32 %v268, 65535
            %v270 = vshrl.u32 %v268, 16
            %v271 = vcvt.s32.f32 %v269
            %v272 = vcvt.s32.f32 %v270
            %273 = vadd.xlane.f32.xlu0 %v271
            %v274 = vpop.xlane.xlu0 %273
            %275 = vadd.xlane.f32.xlu0 %v272
            %v276 = vpop.xlane.xlu0 %275
            %v277 = vcvt.f32.s32 %v274
            %v278 = vcvt.f32.s32 %v276
            %v279 = vshll.u32 %v278, 16
            %v280 = vadd.s32 %v279, %v277
            %v281 = vrot.slane %v280, 4
            %v282 = vadd.s32 %v280, %v281
            %v283 = vrot.slane %v282, 2
            %v284 = vadd.s32 %v282, %v283
            %v285 = vrot.slane %v284, 1
            %v286 = vadd.s32 %v284, %v285
            %s287 = vtos %v286
            %s288 = scalar_lea.smem [#allocation2], %s258
            %289 = sst [smem:[%s288]] %s287
            %s290 = sld [smem:[#allocation3 + %s287]]
            %s291 = scalar_lea.smem [#allocation3], %s287
            %292 = sst [smem:[%s291]] %s258
            %v293 = vstv %s287
            %vm294 = vcmp.eq.s32.totalorder %v142, %v293
            %v295 = vsel %vm294, %v264, %v260
            %p296 = scmp.eq.s32.totalorder %s287, %s154
            %s297 = scalar_select %p296, %s258, %s290
          $region54: #{tpu_custom_call.1} parent=39 // loop_footer
            _
          $region55: #{tpu_custom_call.1} parent=39 // loop_footer_branch
            %257 = sbr.rel target = $region51
          $region56: #{tpu_custom_call.1} parent=39 // loop_exit
            _
          %v298 = vstv %s168
          %vm299 = vcmp.eq.s32.totalorder %v142, %v298
          %v300 = vsel %vm299, 0, %v160
        $region40: #{tpu_custom_call.1} parent=23 // loop_footer
          %s156 = sadd.s32 %s154, 1
        $region41: #{tpu_custom_call.1} parent=23 // loop_footer_branch
          %153 = sbr.rel target = $region37
        $region42: #{tpu_custom_call.1} parent=23 // loop_exit
          _
        %vm301 = vcmask 122880
        %302 = vst.msk [vmem:[%s139] sm:$0x1] %vm301, %v161
        %303 = vst.msk [vmem:[%s139 + $0x1] sm:$0x1] %vm301, %v160
        %s304 = sand.u32 %s57, 1
        %s305 = scalar_lea.sflag [#allocation8], %s304
        %s306 = sand.u32 %s57, 1
        %s307 = smul.addr %s306, 2
        %s308 = scalar_lea.vmem [#allocation9], %s307
        // Predicated region
        $region57: #{tpu_custom_call.1} parent=23 // pred_check
          %p309 = pneg %p67
        $region58: #{tpu_custom_call.1} parent=23 // pred_check_branch
          %311 = sbr.rel (%p309) target = $region60
        $region59: #{tpu_custom_call.1} parent=23 // pred_region
          %s313 = ssub.s32 32, 32
          %314 = vsyncadd %s305, %s313
          %s315 = smul.addr %s23, 32
          %s316 = scalar_lea.hbm %s2, %s315
          %s318 = sshll.u32 %s308, 4
          %s319 = int_to_ptr.vmem [resolvable:$true] %s318
          %321 = dma.vmem_to_hbm [thread:$0]  %s319, 32, %s316, %s305
        $region60: #{tpu_custom_call.1} parent=23 // pred_fallthru
          _
      $region24: #{tpu_custom_call.1} parent=5 // pred_fallthru
        _
      %p322 = scmp.le.s32.totalorder 2, %s18
      // Predicated region
      $region61: #{tpu_custom_call.1} parent=5 // pred_check
        %p323 = pneg %p322
      $region62: #{tpu_custom_call.1} parent=5 // pred_check_branch
        %325 = sbr.rel (%p323) target = $region64
      $region63: #{tpu_custom_call.1} parent=5 // pred_region
        %s326 = ssub.s32 %s18, 2
        // Predicated region
        $region65: #{tpu_custom_call.1} parent=63 // pred_check
          %p327 = pneg %p73
        $region66: #{tpu_custom_call.1} parent=63 // pred_check_branch
          %329 = sbr.rel (%p327) target = $region68
        $region67: #{tpu_custom_call.1} parent=63 // pred_region
          %s330 = sand.u32 %s58, 1
          %s331 = scalar_lea.sflag [#allocation8], %s330
          %s332 = sand.u32 %s58, 1
          %s333 = smul.addr %s332, 2
          %s334 = scalar_lea.vmem [#allocation9], %s333
          %335 = dma.done %s331, 32
        $region68: #{tpu_custom_call.1} parent=63 // pred_fallthru
          _
      $region64: #{tpu_custom_call.1} parent=5 // pred_fallthru
        _
    $region6: #{tpu_custom_call.1} parent=1 // loop_footer
      %s22 = sadd.s32 1, %s18
    $region7: #{tpu_custom_call.1} parent=1 // loop_footer_branch
      %17 = sbr.rel target = $region3
    $region8: #{tpu_custom_call.1} parent=1 // loop_exit
      _
    %336 = vsyncpa [#allocation7], 1
    %s337 = scalar_lea.sflag [#allocation7], 1
    %338 = vsyncpa %s337, 1
    %339 = vsyncpa [#allocation8], 1
    %s340 = scalar_lea.sflag [#allocation8], 1
    %341 = vsyncpa %s340, 1

</llo_original>
